<compile_context>
chip_gen: v7x
topology: tpu7x:2x2x1
jax: 0.10.0
libtpu: 0.0.40
codegen_flags: <defaults>
</compile_context>

<pallas_src>
import math

import jax
import jax.numpy as jnp
from jax.experimental import pallas as pl
from jax.experimental.pallas import tpu as pltpu


def _round_up(x, m):
    return (x + m - 1) // m * m


def _normalize_tile(f):
    """L2-normalize rows of a (tb, D) f32 tile, matching F.normalize eps=1e-12."""
    ssq = jnp.sum(f * f, axis=-1, keepdims=True)          # (tb, 1)
    inv = 1.0 / jnp.maximum(jnp.sqrt(ssq), 1e-12)         # one divide per row
    return f * inv


def _head_kernel(f_ref, w_ref, b_ref, logits_ref, h_ref):
    """Grid = (batch_tiles, class_tiles). Logits only."""
    @pl.when(pl.program_id(1) == 0)
    def _():
        h_ref[...] = _normalize_tile(f_ref[...])

    logits_ref[...] = (
        jnp.dot(h_ref[...], w_ref[...], preferred_element_type=jnp.float32)
        + b_ref[...]
    )


def _head_kernel_with_feats(f_ref, w_ref, b_ref, logits_ref, feat_ref, h_ref):
    """Grid = (batch_tiles, class_tiles). Logits + normalized features."""
    @pl.when(pl.program_id(1) == 0)
    def _():
        h = _normalize_tile(f_ref[...])
        h_ref[...] = h
        feat_ref[...] = h                                  # resident over class axis

    logits_ref[...] = (
        jnp.dot(h_ref[...], w_ref[...], preferred_element_type=jnp.float32)
        + b_ref[...]
    )


def vit_linear_forward(features, fc_weight, fc_bias, *, tb=None, tn=None,
                       return_features=False):
    """features: (B, D) f32 backbone output.
    fc_weight: (num_classes, D) torch layout.  fc_bias: (num_classes,)."""
    B, D = features.shape
    C = fc_weight.shape[0]
    assert fc_weight.shape == (C, D)

    # --- batch tiling: multiple of 8 sublanes, padded batch -----------------
    if tb is None:
        tb = min(256, _round_up(B, 8))
    tb = max(8, _round_up(tb, 8))
    B_pad = _round_up(B, tb)

    # --- class tiling: lane-dense multiple of 128, padded classes -----------
    if tn is None:
        tn = min(512, _round_up(C, 128))
    tn = _round_up(tn, 128)
    C_pad = _round_up(C, tn)

    # Pre-transpose + zero-pad fc params ONCE in the wrapper (one-time XLA op).
    w_t = jnp.zeros((D, C_pad), jnp.float32).at[:, :C].set(
        fc_weight.T.astype(jnp.float32))
    b_p = jnp.zeros((1, C_pad), jnp.float32).at[:, :C].set(
        fc_bias.astype(jnp.float32))

    f_p = features.astype(jnp.float32)
    if B_pad != B:
        f_p = jnp.pad(f_p, ((0, B_pad - B), (0, 0)))

    grid = (B_pad // tb, C_pad // tn)

    in_specs = [
        pl.BlockSpec((tb, D), lambda i, j: (i, 0)),        # features
        pl.BlockSpec((D, tn), lambda i, j: (0, j)),        # fc weight (pre-transposed)
        pl.BlockSpec((1, tn), lambda i, j: (0, j)),        # fc bias
    ]
    logits_spec = pl.BlockSpec((tb, tn), lambda i, j: (i, j))
    compiler_params = pltpu.CompilerParams(
        dimension_semantics=("parallel", "arbitrary"))
    scratch = [pltpu.VMEM((tb, D), jnp.float32)]           # cached normalized tile

    if return_features:
        logits_pad, feats_pad = pl.pallas_call(
            _head_kernel_with_feats,
            out_shape=(
                jax.ShapeDtypeStruct((B_pad, C_pad), jnp.float32),
                jax.ShapeDtypeStruct((B_pad, D), jnp.float32),
            ),
            grid=grid,
            in_specs=in_specs,
            out_specs=(
                logits_spec,
                pl.BlockSpec((tb, D), lambda i, j: (i, 0)),  # resident across j
            ),
            scratch_shapes=scratch,
            compiler_params=compiler_params,
        )(f_p, w_t, b_p)
        return logits_pad[:B, :C], feats_pad[:B]

    logits_pad = pl.pallas_call(
        _head_kernel,
        out_shape=jax.ShapeDtypeStruct((B_pad, C_pad), jnp.float32),
        grid=grid,
        in_specs=in_specs,
        out_specs=logits_spec,
        scratch_shapes=scratch,
        compiler_params=compiler_params,
    )(f_p, w_t, b_p)
    return logits_pad[:B, :C]


def vit_linear_reference(features, fc_weight, fc_bias):
    f = features / jnp.maximum(
        jnp.linalg.norm(features, axis=-1, keepdims=True), 1e-12)
    return f @ fc_weight.T + fc_bias, f


if __name__ == "__main__":
    # Small, module-consistent shapes: (batch, 768) backbone features,
    # fc: Linear(768, 200).  (Images would go to base_vit, which is external.)
    B, D, C = 16, 768, 200

    key = jax.random.PRNGKey(0)
    kf, kw, kb = jax.random.split(key, 3)
    features = jax.random.normal(kf, (B, D), jnp.float32)
    bound = 1.0 / math.sqrt(D)                     # nn.Linear default init range
    fc_weight = jax.random.uniform(kw, (C, D), jnp.float32, -bound, bound)
    fc_bias = jax.random.uniform(kb, (C,), jnp.float32, -bound, bound)

    # Default path (logits only -- no feature writeback).
    logits_only = vit_linear_forward(features, fc_weight, fc_bias)
    logits_only = jax.block_until_ready(logits_only)

    # return_features=True path.
    logits, feats = vit_linear_forward(features, fc_weight, fc_bias,
                                       return_features=True)
    logits = jax.block_until_ready(logits)
    feats = jax.block_until_ready(feats)

    ref_logits, ref_feats = vit_linear_reference(features, fc_weight, fc_bias)

    assert logits_only.shape == (B, C)
    assert logits.shape == (B, C)
    assert feats.shape == (B, D)
    assert jnp.allclose(feats, ref_feats, atol=1e-5, rtol=1e-5), "features mismatch"
    assert jnp.allclose(logits, ref_logits, atol=1e-4, rtol=1e-4), "logits mismatch"
    assert jnp.allclose(logits_only, ref_logits, atol=1e-4, rtol=1e-4), \
        "logits-only mismatch"

    print("KERNEL_OK")
</pallas_src>

<mosaic_0001>
module attributes {stable_mosaic.version = 11 : i64} {
  func.func @_head_kernel(%arg0: i32, %arg1: i32, %arg2: memref<16x768xf32, #tpu.memory_space<vmem>>, %arg3: memref<768x256xf32, #tpu.memory_space<vmem>>, %arg4: memref<1x256xf32, #tpu.memory_space<vmem>>, %arg5: memref<16x256xf32, #tpu.memory_space<vmem>>, %arg6: memref<16x768xf32, #tpu.memory_space<vmem>>) attributes {dimension_semantics = [#tpu.dimension_semantics<parallel>, #tpu.dimension_semantics<arbitrary>], iteration_bounds = array<i64: 1, 1>, scalar_prefetch = 0 : i64, scratch_operands = 1 : i64, tpu.core_type = #tpu.core_type<tc>, window_params = [{transform_indices = @transform_0, window_bounds = array<i64: 16, 768>}, {transform_indices = @transform_1, window_bounds = array<i64: 768, 256>}, {transform_indices = @transform_2, window_bounds = array<i64: 1, 256>}, {transform_indices = @transform_3, window_bounds = array<i64: 16, 256>}]} {
    %c0_i32 = arith.constant 0 : i32
    %0 = arith.cmpi eq, %arg1, %c0_i32 : i32
    %1 = arith.extui %0 : i1 to i32
    %c0_i32_0 = arith.constant 0 : i32
    %2 = arith.cmpi ne, %1, %c0_i32_0 : i32
    scf.if %2 {
      %c0_8 = arith.constant 0 : index
      %c0_9 = arith.constant 0 : index
      %10 = vector.load %arg2[%c0_8, %c0_9] : memref<16x768xf32, #tpu.memory_space<vmem>>, vector<16x768xf32>
      %11 = arith.mulf %10, %10 : vector<16x768xf32>
      %cst_10 = arith.constant dense<0.000000e+00> : vector<16xf32>
      %12 = vector.multi_reduction <add>, %11, %cst_10 [1] : vector<16x768xf32> to vector<16xf32>
      %13 = vector.shape_cast %12 : vector<16xf32> to vector<16x1xf32>
      %14 = math.sqrt %13 : vector<16x1xf32>
      %cst_11 = arith.constant 9.99999996E-13 : f32
      %15 = vector.broadcast %cst_11 : f32 to vector<16x1xf32>
      %16 = arith.maximumf %14, %15 : vector<16x1xf32>
      %cst_12 = arith.constant 1.000000e+00 : f32
      %17 = vector.broadcast %cst_12 : f32 to vector<16x1xf32>
      %18 = arith.divf %17, %16 : vector<16x1xf32>
      %19 = vector.broadcast %18 : vector<16x1xf32> to vector<16x768xf32>
      %20 = arith.mulf %10, %19 : vector<16x768xf32>
      %c0_13 = arith.constant 0 : index
      %c0_14 = arith.constant 0 : index
      %21 = vector.load %arg6[%c0_13, %c0_14] : memref<16x768xf32, #tpu.memory_space<vmem>>, vector<16x768xf32>
      tpu.vector_store %arg6[%c0_13, %c0_14], %20 {strides = array<i32>} : memref<16x768xf32, #tpu.memory_space<vmem>>, vector<16x768xf32>,
    } else {
    }
    %c0 = arith.constant 0 : index
    %c0_1 = arith.constant 0 : index
    %3 = vector.load %arg6[%c0, %c0_1] : memref<16x768xf32, #tpu.memory_space<vmem>>, vector<16x768xf32>
    %c0_2 = arith.constant 0 : index
    %c0_3 = arith.constant 0 : index
    %4 = vector.load %arg3[%c0_2, %c0_3] : memref<768x256xf32, #tpu.memory_space<vmem>>, vector<768x256xf32>
    %cst = arith.constant dense<0.000000e+00> : vector<16x256xf32>
    %5 = tpu.matmul %3, %4, %cst {dimension_numbers = #tpu.dot_dimension_numbers<[1], [0], [0], [1], [0, 0, 1, 1], [], []>} : vector<16x768xf32>, vector<768x256xf32>, vector<16x256xf32> -> vector<16x256xf32>
    %c0_4 = arith.constant 0 : index
    %c0_5 = arith.constant 0 : index
    %6 = vector.load %arg4[%c0_4, %c0_5] : memref<1x256xf32, #tpu.memory_space<vmem>>, vector<1x256xf32>
    %7 = vector.broadcast %6 : vector<1x256xf32> to vector<16x256xf32>
    %8 = arith.addf %5, %7 : vector<16x256xf32>
    %c0_6 = arith.constant 0 : index
    %c0_7 = arith.constant 0 : index
    %9 = vector.load %arg5[%c0_6, %c0_7] : memref<16x256xf32, #tpu.memory_space<vmem>>, vector<16x256xf32>
    tpu.vector_store %arg5[%c0_6, %c0_7], %8 {strides = array<i32>} : memref<16x256xf32, #tpu.memory_space<vmem>>, vector<16x256xf32>,
    return
  }
  func.func @transform_0(%arg0: i32, %arg1: i32) -> (i32, i32) {
    %c0_i32 = arith.constant 0 : i32
    %c0_i32_0 = arith.constant 0 : i32
    return %arg0, %c0_i32 : i32, i32
  }
  func.func @transform_1(%arg0: i32, %arg1: i32) -> (i32, i32) {
    %c0_i32 = arith.constant 0 : i32
    %c0_i32_0 = arith.constant 0 : i32
    return %c0_i32, %arg1 : i32, i32
  }
  func.func @transform_2(%arg0: i32, %arg1: i32) -> (i32, i32) {
    %c0_i32 = arith.constant 0 : i32
    %c0_i32_0 = arith.constant 0 : i32
    return %c0_i32, %arg1 : i32, i32
  }
  func.func @transform_3(%arg0: i32, %arg1: i32) -> (i32, i32) {
    %c0_i32 = arith.constant 0 : i32
    return %arg0, %arg1 : i32, i32
  }
}

</mosaic_0001>

<llo_original>
// kernel: tpu_custom_call.1
$region0: #{tpu_custom_call.1}
  #allocation0 [shape = 'u32[]', space=smem, size = 0x4, offset = 0x4, fixed_abs, tag = 'smem constant byte address 0x4 - core index']
  #allocation1 [shape = 'u32[144,128]{1,0:T(1,128)}', space=vmem, size = 0x12000, scoped, tag = 'internal scratch']
  #allocation2 [shape = 'f32[16,768]{1,0:T(8,128)}', space=vmem, size = 0xc000, scoped, tag = 'scratch operand']
  %s0 = inlined_call_operand.hbm [shape: f32[16,768], index: 0, kind: input, shape index: {}]
  %s1 = inlined_call_operand.hbm [shape: f32[768,256], index: 1, kind: input, shape index: {}]
  %s2 = inlined_call_operand.vmem [shape: f32[1,256], index: 2, kind: input, shape index: {}]
  %s3 = inlined_call_operand.hbm [shape: f32[16,256], index: 3, kind: output, shape index: {}]
  %s4 = sld [smem:[#allocation0]]
  $region34: #{tpu_custom_call.1} parent=0
    _
  %s6 = ssub.s32 1, %s4
  %s7 = scalar_select 0, %s6, %s4
  $region1: #{tpu_custom_call.1} parent=0
    #allocation3 [shape = 'u8[49152]{0}', space=vmem, size = 0xc000, scoped, tag = 'input window, operand 0, single buffered']
    #allocation4 [shape = 's32[1]{0}', space=sflag, size = 0x4, scoped, tag = 'scoped memory for tpu_custom_call.1']
    #allocation5 [shape = 's32[1]{0}', space=sflag, size = 0x4, scoped, tag = 'scoped memory for tpu_custom_call.1']
    #allocation6 [shape = 'u8[786432]{0}', space=vmem, size = 0xc0000, scoped, tag = 'input window, operand 1, single buffered']
    #allocation7 [shape = 's32[1]{0}', space=sflag, size = 0x4, scoped, tag = 'scoped memory for tpu_custom_call.1']
    #allocation8 [shape = 'u8[16384]{0}', space=vmem, size = 0x4000, scoped, tag = 'output window, operand 0, single buffered']
    %8 = vsyncpa [#allocation4], 0
    %9 = vsyncpa [#allocation7], 0
    %10 = vsyncpa [#allocation5], 0
    // Predicated region
    $region2: #{tpu_custom_call.1} parent=1 // pred_check
      _
    $region3: #{tpu_custom_call.1} parent=1 // pred_check_branch
      %12 = sbr.rel (0) target = $region5
    $region4: #{tpu_custom_call.1} parent=1 // pred_region
      %s14 = ssub.s32 1536, 1536
      %15 = vsyncadd [#allocation4], %s14
      %s16 = sshll.u32 [#allocation3], 4
      %s17 = int_to_ptr.vmem [resolvable:$true] %s16
      %22 = dma.hbm_to_vmem [thread:$0]  %s0, 1536, %s17, [#allocation4], 768, 768, 48
    $region5: #{tpu_custom_call.1} parent=1 // pred_fallthru
      _
    // Predicated region
    $region6: #{tpu_custom_call.1} parent=1 // pred_check
      _
    $region7: #{tpu_custom_call.1} parent=1 // pred_check_branch
      %24 = sbr.rel (0) target = $region9
    $region8: #{tpu_custom_call.1} parent=1 // pred_region
      %s26 = ssub.s32 24576, 24576
      %27 = vsyncadd [#allocation7], %s26
      %s28 = sshll.u32 [#allocation6], 4
      %s29 = int_to_ptr.vmem [resolvable:$true] %s28
      %34 = dma.hbm_to_vmem [thread:$0]  %s1, 24576, %s29, [#allocation7], 256, 256, 16
    $region9: #{tpu_custom_call.1} parent=1 // pred_fallthru
      _
    // Predicated region
    $region10: #{tpu_custom_call.1} parent=1 // pred_check
      _
    $region11: #{tpu_custom_call.1} parent=1 // pred_check_branch
      %36 = sbr.rel (0) target = $region13
    $region12: #{tpu_custom_call.1} parent=1 // pred_region
      _
    $region13: #{tpu_custom_call.1} parent=1 // pred_fallthru
      _
    // Predicated region
    $region14: #{tpu_custom_call.1} parent=1 // pred_check
      _
    $region15: #{tpu_custom_call.1} parent=1 // pred_check_branch
      %38 = sbr.rel (0) target = $region17
    $region16: #{tpu_custom_call.1} parent=1 // pred_region
      %39 = dma.done [#allocation4], 1536
    $region17: #{tpu_custom_call.1} parent=1 // pred_fallthru
      _
    // Predicated region
    $region18: #{tpu_custom_call.1} parent=1 // pred_check
      _
    $region19: #{tpu_custom_call.1} parent=1 // pred_check_branch
      %41 = sbr.rel (0) target = $region21
    $region20: #{tpu_custom_call.1} parent=1 // pred_region
      %42 = dma.done [#allocation7], 24576
    $region21: #{tpu_custom_call.1} parent=1 // pred_fallthru
      _
    %p43 = scmp.eq.s32.totalorder 0, 0
    // Predicated region
    $region22: #{tpu_custom_call.1} parent=1 // pred_check
      %p44 = pneg %p43
    $region23: #{tpu_custom_call.1} parent=1 // pred_check_branch
      %46 = sbr.rel (%p44) target = $region25
    $region24: #{tpu_custom_call.1} parent=1 // pred_region
      %v47 = vld [vmem:[#allocation3] sm:$0xff]
      %v48 = vld [vmem:[#allocation3 + $0x8] sm:$0xff]
      %v49 = vld [vmem:[#allocation3 + $0x10] sm:$0xff]
      %v50 = vld [vmem:[#allocation3 + $0x18] sm:$0xff]
      %v51 = vld [vmem:[#allocation3 + $0x20] sm:$0xff]
      %v52 = vld [vmem:[#allocation3 + $0x28] sm:$0xff]
      %v53 = vld [vmem:[#allocation3 + $0x30] sm:$0xff]
      %v54 = vld [vmem:[#allocation3 + $0x38] sm:$0xff]
      %v55 = vld [vmem:[#allocation3 + $0x40] sm:$0xff]
      %v56 = vld [vmem:[#allocation3 + $0x48] sm:$0xff]
      %v57 = vld [vmem:[#allocation3 + $0x50] sm:$0xff]
      %v58 = vld [vmem:[#allocation3 + $0x58] sm:$0xff]
      %v59 = vmul.f32 %v47, %v47
      %v60 = vmul.f32 %v48, %v48
      %v61 = vmul.f32 %v49, %v49
      %v62 = vmul.f32 %v50, %v50
      %v63 = vmul.f32 %v51, %v51
      %v64 = vmul.f32 %v52, %v52
      %v65 = vmul.f32 %v53, %v53
      %v66 = vmul.f32 %v54, %v54
      %v67 = vmul.f32 %v55, %v55
      %v68 = vmul.f32 %v56, %v56
      %v69 = vmul.f32 %v57, %v57
      %v70 = vmul.f32 %v58, %v58
      %v71 = vadd.f32 %v59, %v60
      %v72 = vadd.f32 %v71, %v61
      %v73 = vadd.f32 %v72, %v62
      %v74 = vadd.f32 %v73, %v63
      %v75 = vadd.f32 %v74, %v64
      %76 = vadd.xlane.f32.xlu0 %v75
      %v77 = vpop.xlane.xlu0 %76
      %v78 = vadd.f32 %v65, %v66
      %v79 = vadd.f32 %v78, %v67
      %v80 = vadd.f32 %v79, %v68
      %v81 = vadd.f32 %v80, %v69
      %v82 = vadd.f32 %v81, %v70
      %83 = vadd.xlane.f32.xlu0 %v82
      %v84 = vpop.xlane.xlu0 %83
      %v85 = vrsqrt.pop %v77
      %v86 = vmul.f32 %v77, %v85
      %vm87 = vcmp.eq.f32.partialorder %v77, inf
      %v88 = vsel %vm87, %v77, %v86
      %vm89 = vcmp.eq.f32.partialorder %v77, 0.0
      %v90 = vand.u32 %v77, 2147483648
      %v91 = vsel %vm89, %v90, %v88
      %v92 = vrsqrt.pop %v84
      %v93 = vmul.f32 %v84, %v92
      %vm94 = vcmp.eq.f32.partialorder %v84, inf
      %v95 = vsel %vm94, %v84, %v93
      %vm96 = vcmp.eq.f32.partialorder %v84, 0.0
      %v97 = vand.u32 %v84, 2147483648
      %v98 = vsel %vm96, %v97, %v95
      %v99 = vmax.f32 %v91, 1e-12
      %v100 = vmax.f32 %v98, 1e-12
      %v101 = vrcp.pop %v99
      %v102 = vmul.f32 1.0, %v101
      %v103 = vrcp.pop %v100
      %v104 = vmul.f32 1.0, %v103
      %v105 = vmul.f32 %v47, %v102
      %v106 = vmul.f32 %v48, %v102
      %v107 = vmul.f32 %v49, %v102
      %v108 = vmul.f32 %v50, %v102
      %v109 = vmul.f32 %v51, %v102
      %v110 = vmul.f32 %v52, %v102
      %v111 = vmul.f32 %v53, %v104
      %v112 = vmul.f32 %v54, %v104
      %v113 = vmul.f32 %v55, %v104
      %v114 = vmul.f32 %v56, %v104
      %v115 = vmul.f32 %v57, %v104
      %v116 = vmul.f32 %v58, %v104
      %117 = vst [vmem:[#allocation2] sm:$0xff] %v105
      %118 = vst [vmem:[#allocation2 + $0x8] sm:$0xff] %v106
      %119 = vst [vmem:[#allocation2 + $0x10] sm:$0xff] %v107
      %120 = vst [vmem:[#allocation2 + $0x18] sm:$0xff] %v108
      %121 = vst [vmem:[#allocation2 + $0x20] sm:$0xff] %v109
      %122 = vst [vmem:[#allocation2 + $0x28] sm:$0xff] %v110
      %123 = vst [vmem:[#allocation2 + $0x30] sm:$0xff] %v111
      %124 = vst [vmem:[#allocation2 + $0x38] sm:$0xff] %v112
      %125 = vst [vmem:[#allocation2 + $0x40] sm:$0xff] %v113
      %126 = vst [vmem:[#allocation2 + $0x48] sm:$0xff] %v114
      %127 = vst [vmem:[#allocation2 + $0x50] sm:$0xff] %v115
      %128 = vst [vmem:[#allocation2 + $0x58] sm:$0xff] %v116
    $region25: #{tpu_custom_call.1} parent=1 // pred_fallthru
      _
    %v129 = vld [vmem:[#allocation2] sm:$0xff]
    %v130 = vld [vmem:[#allocation2 + $0x8] sm:$0xff]
    %v131 = vld [vmem:[#allocation2 + $0x10] sm:$0xff]
    %v132 = vld [vmem:[#allocation2 + $0x18] sm:$0xff]
    %v133 = vld [vmem:[#allocation2 + $0x20] sm:$0xff]
    %v134 = vld [vmem:[#allocation2 + $0x28] sm:$0xff]
    %v135 = vld [vmem:[#allocation2 + $0x30] sm:$0xff]
    %v136 = vld [vmem:[#allocation2 + $0x38] sm:$0xff]
    %v137 = vld [vmem:[#allocation2 + $0x40] sm:$0xff]
    %v138 = vld [vmem:[#allocation2 + $0x48] sm:$0xff]
    %v139 = vld [vmem:[#allocation2 + $0x50] sm:$0xff]
    %v140 = vld [vmem:[#allocation2 + $0x58] sm:$0xff]
    %v141 = vld [vmem:[#allocation6] sm:$0xff]
    %v142 = vld [vmem:[#allocation6 + $0x8] sm:$0xff]
    %v143 = vld [vmem:[#allocation6 + $0x10] sm:$0xff]
    %v144 = vld [vmem:[#allocation6 + $0x18] sm:$0xff]
    %v145 = vld [vmem:[#allocation6 + $0x20] sm:$0xff]
    %v146 = vld [vmem:[#allocation6 + $0x28] sm:$0xff]
    %v147 = vld [vmem:[#allocation6 + $0x30] sm:$0xff]
    %v148 = vld [vmem:[#allocation6 + $0x38] sm:$0xff]
    %v149 = vld [vmem:[#allocation6 + $0x40] sm:$0xff]
    %v150 = vld [vmem:[#allocation6 + $0x48] sm:$0xff]
    %v151 = vld [vmem:[#allocation6 + $0x50] sm:$0xff]
    %v152 = vld [vmem:[#allocation6 + $0x58] sm:$0xff]
    %v153 = vld [vmem:[#allocation6 + $0x60] sm:$0xff]
    %v154 = vld [vmem:[#allocation6 + $0x68] sm:$0xff]
    %v155 = vld [vmem:[#allocation6 + $0x70] sm:$0xff]
    %v156 = vld [vmem:[#allocation6 + $0x78] sm:$0xff]
    %v157 = vld [vmem:[#allocation6 + $0x80] sm:$0xff]
    %v158 = vld [vmem:[#allocation6 + $0x88] sm:$0xff]
    %v159 = vld [vmem:[#allocation6 + $0x90] sm:$0xff]
    %v160 = vld [vmem:[#allocation6 + $0x98] sm:$0xff]
    %v161 = vld [vmem:[#allocation6 + $0xa0] sm:$0xff]
    %v162 = vld [vmem:[#allocation6 + $0xa8] sm:$0xff]
    %v163 = vld [vmem:[#allocation6 + $0xb0] sm:$0xff]
    %v164 = vld [vmem:[#allocation6 + $0xb8] sm:$0xff]
    %v165 = vld [vmem:[#allocation6 + $0xc0] sm:$0xff]
    %v166 = vld [vmem:[#allocation6 + $0xc8] sm:$0xff]
    %v167 = vld [vmem:[#allocation6 + $0xd0] sm:$0xff]
    %v168 = vld [vmem:[#allocation6 + $0xd8] sm:$0xff]
    %v169 = vld [vmem:[#allocation6 + $0xe0] sm:$0xff]
    %v170 = vld [vmem:[#allocation6 + $0xe8] sm:$0xff]
    %v171 = vld [vmem:[#allocation6 + $0xf0] sm:$0xff]
    %v172 = vld [vmem:[#allocation6 + $0xf8] sm:$0xff]
    %v173 = vld [vmem:[#allocation6 + $0x100] sm:$0xff]
    %v174 = vld [vmem:[#allocation6 + $0x108] sm:$0xff]
    %v175 = vld [vmem:[#allocation6 + $0x110] sm:$0xff]
    %v176 = vld [vmem:[#allocation6 + $0x118] sm:$0xff]
    %v177 = vld [vmem:[#allocation6 + $0x120] sm:$0xff]
    %v178 = vld [vmem:[#allocation6 + $0x128] sm:$0xff]
    %v179 = vld [vmem:[#allocation6 + $0x130] sm:$0xff]
    %v180 = vld [vmem:[#allocation6 + $0x138] sm:$0xff]
    %v181 = vld [vmem:[#allocation6 + $0x140] sm:$0xff]
    %v182 = vld [vmem:[#allocation6 + $0x148] sm:$0xff]
    %v183 = vld [vmem:[#allocation6 + $0x150] sm:$0xff]
    %v184 = vld [vmem:[#allocation6 + $0x158] sm:$0xff]
    %v185 = vld [vmem:[#allocation6 + $0x160] sm:$0xff]
    %v186 = vld [vmem:[#allocation6 + $0x168] sm:$0xff]
    %v187 = vld [vmem:[#allocation6 + $0x170] sm:$0xff]
    %v188 = vld [vmem:[#allocation6 + $0x178] sm:$0xff]
    %v189 = vld [vmem:[#allocation6 + $0x180] sm:$0xff]
    %v190 = vld [vmem:[#allocation6 + $0x188] sm:$0xff]
    %v191 = vld [vmem:[#allocation6 + $0x190] sm:$0xff]
    %v192 = vld [vmem:[#allocation6 + $0x198] sm:$0xff]
    %v193 = vld [vmem:[#allocation6 + $0x1a0] sm:$0xff]
    %v194 = vld [vmem:[#allocation6 + $0x1a8] sm:$0xff]
    %v195 = vld [vmem:[#allocation6 + $0x1b0] sm:$0xff]
    %v196 = vld [vmem:[#allocation6 + $0x1b8] sm:$0xff]
    %v197 = vld [vmem:[#allocation6 + $0x1c0] sm:$0xff]
    %v198 = vld [vmem:[#allocation6 + $0x1c8] sm:$0xff]
    %v199 = vld [vmem:[#allocation6 + $0x1d0] sm:$0xff]
    %v200 = vld [vmem:[#allocation6 + $0x1d8] sm:$0xff]
    %v201 = vld [vmem:[#allocation6 + $0x1e0] sm:$0xff]
    %v202 = vld [vmem:[#allocation6 + $0x1e8] sm:$0xff]
    %v203 = vld [vmem:[#allocation6 + $0x1f0] sm:$0xff]
    %v204 = vld [vmem:[#allocation6 + $0x1f8] sm:$0xff]
    %v205 = vld [vmem:[#allocation6 + $0x200] sm:$0xff]
    %v206 = vld [vmem:[#allocation6 + $0x208] sm:$0xff]
    %v207 = vld [vmem:[#allocation6 + $0x210] sm:$0xff]
    %v208 = vld [vmem:[#allocation6 + $0x218] sm:$0xff]
    %v209 = vld [vmem:[#allocation6 + $0x220] sm:$0xff]
    %v210 = vld [vmem:[#allocation6 + $0x228] sm:$0xff]
    %v211 = vld [vmem:[#allocation6 + $0x230] sm:$0xff]
    %v212 = vld [vmem:[#allocation6 + $0x238] sm:$0xff]
    %v213 = vld [vmem:[#allocation6 + $0x240] sm:$0xff]
    %v214 = vld [vmem:[#allocation6 + $0x248] sm:$0xff]
    %v215 = vld [vmem:[#allocation6 + $0x250] sm:$0xff]
    %v216 = vld [vmem:[#allocation6 + $0x258] sm:$0xff]
    %v217 = vld [vmem:[#allocation6 + $0x260] sm:$0xff]
    %v218 = vld [vmem:[#allocation6 + $0x268] sm:$0xff]
    %v219 = vld [vmem:[#allocation6 + $0x270] sm:$0xff]
    %v220 = vld [vmem:[#allocation6 + $0x278] sm:$0xff]
    %v221 = vld [vmem:[#allocation6 + $0x280] sm:$0xff]
    %v222 = vld [vmem:[#allocation6 + $0x288] sm:$0xff]
    %v223 = vld [vmem:[#allocation6 + $0x290] sm:$0xff]
    %v224 = vld [vmem:[#allocation6 + $0x298] sm:$0xff]
    %v225 = vld [vmem:[#allocation6 + $0x2a0] sm:$0xff]
    %v226 = vld [vmem:[#allocation6 + $0x2a8] sm:$0xff]
    %v227 = vld [vmem:[#allocation6 + $0x2b0] sm:$0xff]
    %v228 = vld [vmem:[#allocation6 + $0x2b8] sm:$0xff]
    %v229 = vld [vmem:[#allocation6 + $0x2c0] sm:$0xff]
    %v230 = vld [vmem:[#allocation6 + $0x2c8] sm:$0xff]
    %v231 = vld [vmem:[#allocation6 + $0x2d0] sm:$0xff]
    %v232 = vld [vmem:[#allocation6 + $0x2d8] sm:$0xff]
    %v233 = vld [vmem:[#allocation6 + $0x2e0] sm:$0xff]
    %v234 = vld [vmem:[#allocation6 + $0x2e8] sm:$0xff]
    %v235 = vld [vmem:[#allocation6 + $0x2f0] sm:$0xff]
    %v236 = vld [vmem:[#allocation6 + $0x2f8] sm:$0xff]
    %v237 = vld [vmem:[#allocation6 + $0x300] sm:$0xff]
    %v238 = vld [vmem:[#allocation6 + $0x308] sm:$0xff]
    %v239 = vld [vmem:[#allocation6 + $0x310] sm:$0xff]
    %v240 = vld [vmem:[#allocation6 + $0x318] sm:$0xff]
    %v241 = vld [vmem:[#allocation6 + $0x320] sm:$0xff]
    %v242 = vld [vmem:[#allocation6 + $0x328] sm:$0xff]
    %v243 = vld [vmem:[#allocation6 + $0x330] sm:$0xff]
    %v244 = vld [vmem:[#allocation6 + $0x338] sm:$0xff]
    %v245 = vld [vmem:[#allocation6 + $0x340] sm:$0xff]
    %v246 = vld [vmem:[#allocation6 + $0x348] sm:$0xff]
    %v247 = vld [vmem:[#allocation6 + $0x350] sm:$0xff]
    %v248 = vld [vmem:[#allocation6 + $0x358] sm:$0xff]
    %v249 = vld [vmem:[#allocation6 + $0x360] sm:$0xff]
    %v250 = vld [vmem:[#allocation6 + $0x368] sm:$0xff]
    %v251 = vld [vmem:[#allocation6 + $0x370] sm:$0xff]
    %v252 = vld [vmem:[#allocation6 + $0x378] sm:$0xff]
    %v253 = vld [vmem:[#allocation6 + $0x380] sm:$0xff]
    %v254 = vld [vmem:[#allocation6 + $0x388] sm:$0xff]
    %v255 = vld [vmem:[#allocation6 + $0x390] sm:$0xff]
    %v256 = vld [vmem:[#allocation6 + $0x398] sm:$0xff]
    %v257 = vld [vmem:[#allocation6 + $0x3a0] sm:$0xff]
    %v258 = vld [vmem:[#allocation6 + $0x3a8] sm:$0xff]
    %v259 = vld [vmem:[#allocation6 + $0x3b0] sm:$0xff]
    %v260 = vld [vmem:[#allocation6 + $0x3b8] sm:$0xff]
    %v261 = vld [vmem:[#allocation6 + $0x3c0] sm:$0xff]
    %v262 = vld [vmem:[#allocation6 + $0x3c8] sm:$0xff]
    %v263 = vld [vmem:[#allocation6 + $0x3d0] sm:$0xff]
    %v264 = vld [vmem:[#allocation6 + $0x3d8] sm:$0xff]
    %v265 = vld [vmem:[#allocation6 + $0x3e0] sm:$0xff]
    %v266 = vld [vmem:[#allocation6 + $0x3e8] sm:$0xff]
    %v267 = vld [vmem:[#allocation6 + $0x3f0] sm:$0xff]
    %v268 = vld [vmem:[#allocation6 + $0x3f8] sm:$0xff]
    %v269 = vld [vmem:[#allocation6 + $0x400] sm:$0xff]
    %v270 = vld [vmem:[#allocation6 + $0x408] sm:$0xff]
    %v271 = vld [vmem:[#allocation6 + $0x410] sm:$0xff]
    %v272 = vld [vmem:[#allocation6 + $0x418] sm:$0xff]
    %v273 = vld [vmem:[#allocation6 + $0x420] sm:$0xff]
    %v274 = vld [vmem:[#allocation6 + $0x428] sm:$0xff]
    %v275 = vld [vmem:[#allocation6 + $0x430] sm:$0xff]
    %v276 = vld [vmem:[#allocation6 + $0x438] sm:$0xff]
    %v277 = vld [vmem:[#allocation6 + $0x440] sm:$0xff]
    %v278 = vld [vmem:[#allocation6 + $0x448] sm:$0xff]
    %v279 = vld [vmem:[#allocation6 + $0x450] sm:$0xff]
    %v280 = vld [vmem:[#allocation6 + $0x458] sm:$0xff]
    %v281 = vld [vmem:[#allocation6 + $0x460] sm:$0xff]
    %v282 = vld [vmem:[#allocation6 + $0x468] sm:$0xff]
    %v283 = vld [vmem:[#allocation6 + $0x470] sm:$0xff]
    %v284 = vld [vmem:[#allocation6 + $0x478] sm:$0xff]
    %v285 = vld [vmem:[#allocation6 + $0x480] sm:$0xff]
    %v286 = vld [vmem:[#allocation6 + $0x488] sm:$0xff]
    %v287 = vld [vmem:[#allocation6 + $0x490] sm:$0xff]
    %v288 = vld [vmem:[#allocation6 + $0x498] sm:$0xff]
    %v289 = vld [vmem:[#allocation6 + $0x4a0] sm:$0xff]
    %v290 = vld [vmem:[#allocation6 + $0x4a8] sm:$0xff]
    %v291 = vld [vmem:[#allocation6 + $0x4b0] sm:$0xff]
    %v292 = vld [vmem:[#allocation6 + $0x4b8] sm:$0xff]
    %v293 = vld [vmem:[#allocation6 + $0x4c0] sm:$0xff]
    %v294 = vld [vmem:[#allocation6 + $0x4c8] sm:$0xff]
    %v295 = vld [vmem:[#allocation6 + $0x4d0] sm:$0xff]
    %v296 = vld [vmem:[#allocation6 + $0x4d8] sm:$0xff]
    %v297 = vld [vmem:[#allocation6 + $0x4e0] sm:$0xff]
    %v298 = vld [vmem:[#allocation6 + $0x4e8] sm:$0xff]
    %v299 = vld [vmem:[#allocation6 + $0x4f0] sm:$0xff]
    %v300 = vld [vmem:[#allocation6 + $0x4f8] sm:$0xff]
    %v301 = vld [vmem:[#allocation6 + $0x500] sm:$0xff]
    %v302 = vld [vmem:[#allocation6 + $0x508] sm:$0xff]
    %v303 = vld [vmem:[#allocation6 + $0x510] sm:$0xff]
    %v304 = vld [vmem:[#allocation6 + $0x518] sm:$0xff]
    %v305 = vld [vmem:[#allocation6 + $0x520] sm:$0xff]
    %v306 = vld [vmem:[#allocation6 + $0x528] sm:$0xff]
    %v307 = vld [vmem:[#allocation6 + $0x530] sm:$0xff]
    %v308 = vld [vmem:[#allocation6 + $0x538] sm:$0xff]
    %v309 = vld [vmem:[#allocation6 + $0x540] sm:$0xff]
    %v310 = vld [vmem:[#allocation6 + $0x548] sm:$0xff]
    %v311 = vld [vmem:[#allocation6 + $0x550] sm:$0xff]
    %v312 = vld [vmem:[#allocation6 + $0x558] sm:$0xff]
    %v313 = vld [vmem:[#allocation6 + $0x560] sm:$0xff]
    %v314 = vld [vmem:[#allocation6 + $0x568] sm:$0xff]
    %v315 = vld [vmem:[#allocation6 + $0x570] sm:$0xff]
    %v316 = vld [vmem:[#allocation6 + $0x578] sm:$0xff]
    %v317 = vld [vmem:[#allocation6 + $0x580] sm:$0xff]
    %v318 = vld [vmem:[#allocation6 + $0x588] sm:$0xff]
    %v319 = vld [vmem:[#allocation6 + $0x590] sm:$0xff]
    %v320 = vld [vmem:[#allocation6 + $0x598] sm:$0xff]
    %v321 = vld [vmem:[#allocation6 + $0x5a0] sm:$0xff]
    %v322 = vld [vmem:[#allocation6 + $0x5a8] sm:$0xff]
    %v323 = vld [vmem:[#allocation6 + $0x5b0] sm:$0xff]
    %v324 = vld [vmem:[#allocation6 + $0x5b8] sm:$0xff]
    %v325 = vld [vmem:[#allocation6 + $0x5c0] sm:$0xff]
    %v326 = vld [vmem:[#allocation6 + $0x5c8] sm:$0xff]
    %v327 = vld [vmem:[#allocation6 + $0x5d0] sm:$0xff]
    %v328 = vld [vmem:[#allocation6 + $0x5d8] sm:$0xff]
    %v329 = vld [vmem:[#allocation6 + $0x5e0] sm:$0xff]
    %v330 = vld [vmem:[#allocation6 + $0x5e8] sm:$0xff]
    %v331 = vld [vmem:[#allocation6 + $0x5f0] sm:$0xff]
    %v332 = vld [vmem:[#allocation6 + $0x5f8] sm:$0xff]
    %v333 = vld [vmem:[%s2] sm:$0x3]
    %v335 = vlaneseq
    %v336 = vshrl.u32 %v335, 7
    %v337 = vsub.s32 0, %v336
    %v338 = vrot.slane %v333, %v337
    %v339 = vlaneseq
    %v340 = vshrl.u32 %v339, 7
    %v341 = vsub.s32 1, %v340
    %v342 = vrot.slane %v333, %v341
    %345 = vmatprep.subr.mxu0 %v142
    %346 = vmatpush1.msra.mxu0 %v141
    %347 = vmatprep.subr.mxu0 %v144
    %348 = vmatpush1.msra.mxu0 %v143
    %349 = vmatprep.subr.mxu0 %v146
    %350 = vmatpush1.msra.mxu0 %v145
    %351 = vmatprep.subr.mxu0 %v148
    %352 = vmatpush1.msra.mxu0 %v147
    %353 = vmatprep.subr.mxu0 %v150
    %354 = vmatpush1.msra.mxu0 %v149
    %355 = vmatprep.subr.mxu0 %v152
    %356 = vmatpush1.msra.mxu0 %v151
    %357 = vmatprep.subr.mxu0 %v154
    %358 = vmatpush1.msra.mxu0 %v153
    %359 = vmatprep.subr.mxu0 %v156
    %360 = vmatpush1.msra.mxu0 %v155
    %361 = vmatprep.subr.mxu0 %v158
    %362 = vmatpush1.msra.mxu0 %v157
    %363 = vmatprep.subr.mxu0 %v160
    %364 = vmatpush1.msra.mxu0 %v159
    %365 = vmatprep.subr.mxu0 %v162
    %366 = vmatpush1.msra.mxu0 %v161
    %367 = vmatprep.subr.mxu0 %v164
    %368 = vmatpush1.msra.mxu0 %v163
    %369 = vmatprep.subr.mxu0 %v166
    %370 = vmatpush1.msra.mxu0 %v165
    %371 = vmatprep.subr.mxu0 %v168
    %372 = vmatpush1.msra.mxu0 %v167
    %373 = vmatprep.subr.mxu0 %v170
    %374 = vmatpush1.msra.mxu0 %v169
    %375 = vmatprep.subr.mxu0 %v172
    %376 = vmatpush1.msra.mxu0 %v171
    %377 = vmatprep.subr.mxu0 %v174
    %378 = vmatpush1.msra.mxu0 %v173
    %379 = vmatprep.subr.mxu0 %v176
    %380 = vmatpush1.msra.mxu0 %v175
    %381 = vmatprep.subr.mxu0 %v178
    %382 = vmatpush1.msra.mxu0 %v177
    %383 = vmatprep.subr.mxu0 %v180
    %384 = vmatpush1.msra.mxu0 %v179
    %385 = vmatprep.subr.mxu0 %v182
    %386 = vmatpush1.msra.mxu0 %v181
    %387 = vmatprep.subr.mxu0 %v184
    %388 = vmatpush1.msra.mxu0 %v183
    %389 = vmatprep.subr.mxu0 %v186
    %390 = vmatpush1.msra.mxu0 %v185
    %391 = vmatprep.subr.mxu0 %v188
    %392 = vmatpush1.msra.mxu0 %v187
    %393 = vmatprep.subr.mxu0 %v190
    %394 = vmatpush1.msra.mxu0 %v189
    %395 = vmatprep.subr.mxu0 %v192
    %396 = vmatpush1.msra.mxu0 %v191
    %397 = vmatprep.subr.mxu0 %v194
    %398 = vmatpush1.msra.mxu0 %v193
    %399 = vmatprep.subr.mxu0 %v196
    %400 = vmatpush1.msra.mxu0 %v195
    %401 = vmatprep.subr.mxu0 %v198
    %402 = vmatpush1.msra.mxu0 %v197
    %403 = vmatprep.subr.mxu0 %v200
    %404 = vmatpush1.msra.mxu0 %v199
    %405 = vmatprep.subr.mxu0 %v202
    %406 = vmatpush1.msra.mxu0 %v201
    %407 = vmatprep.subr.mxu0 %v204
    %408 = vmatpush1.msra.mxu0 %v203
    %409 = vmatprep.mubr.f32.mxu0 %v130
    %410 = vmatmul.mubr.f32.gmra.mrb[0].mxu0 %v129
    %v411 = vpop.f32.mrb[0].mxu0
    %v412 = vadd.f32 %v338, %v411
    %v413 = vpop.f32.mrb[0].mxu0
    %v414 = vadd.f32 %v342, %v413
    %415 = vmatprep.mubr.f32.mxu0 %v136
    %416 = vmatmul.mubr.f32.gmra.mrb[0].mxu0 %v135
    %v417 = vpop.f32.mrb[0].mxu0
    %v418 = vadd.f32 %v338, %v417
    %v419 = vpop.f32.mrb[0].mxu0
    %v420 = vadd.f32 %v342, %v419
    %421 = vdwg.mxu0
    %422 = vmatprep.subr.mxu0 %v206
    %423 = vmatpush1.msra.mxu0 %v205
    %424 = vmatprep.subr.mxu0 %v208
    %425 = vmatpush1.msra.mxu0 %v207
    %426 = vmatprep.subr.mxu0 %v210
    %427 = vmatpush1.msra.mxu0 %v209
    %428 = vmatprep.subr.mxu0 %v212
    %429 = vmatpush1.msra.mxu0 %v211
    %430 = vmatprep.subr.mxu0 %v214
    %431 = vmatpush1.msra.mxu0 %v213
    %432 = vmatprep.subr.mxu0 %v216
    %433 = vmatpush1.msra.mxu0 %v215
    %434 = vmatprep.subr.mxu0 %v218
    %435 = vmatpush1.msra.mxu0 %v217
    %436 = vmatprep.subr.mxu0 %v220
    %437 = vmatpush1.msra.mxu0 %v219
    %438 = vmatprep.subr.mxu0 %v222
    %439 = vmatpush1.msra.mxu0 %v221
    %440 = vmatprep.subr.mxu0 %v224
    %441 = vmatpush1.msra.mxu0 %v223
    %442 = vmatprep.subr.mxu0 %v226
    %443 = vmatpush1.msra.mxu0 %v225
    %444 = vmatprep.subr.mxu0 %v228
    %445 = vmatpush1.msra.mxu0 %v227
    %446 = vmatprep.subr.mxu0 %v230
    %447 = vmatpush1.msra.mxu0 %v229
    %448 = vmatprep.subr.mxu0 %v232
    %449 = vmatpush1.msra.mxu0 %v231
    %450 = vmatprep.subr.mxu0 %v234
    %451 = vmatpush1.msra.mxu0 %v233
    %452 = vmatprep.subr.mxu0 %v236
    %453 = vmatpush1.msra.mxu0 %v235
    %454 = vmatprep.subr.mxu0 %v238
    %455 = vmatpush1.msra.mxu0 %v237
    %456 = vmatprep.subr.mxu0 %v240
    %457 = vmatpush1.msra.mxu0 %v239
    %458 = vmatprep.subr.mxu0 %v242
    %459 = vmatpush1.msra.mxu0 %v241
    %460 = vmatprep.subr.mxu0 %v244
    %461 = vmatpush1.msra.mxu0 %v243
    %462 = vmatprep.subr.mxu0 %v246
    %463 = vmatpush1.msra.mxu0 %v245
    %464 = vmatprep.subr.mxu0 %v248
    %465 = vmatpush1.msra.mxu0 %v247
    %466 = vmatprep.subr.mxu0 %v250
    %467 = vmatpush1.msra.mxu0 %v249
    %468 = vmatprep.subr.mxu0 %v252
    %469 = vmatpush1.msra.mxu0 %v251
    %470 = vmatprep.subr.mxu0 %v254
    %471 = vmatpush1.msra.mxu0 %v253
    %472 = vmatprep.subr.mxu0 %v256
    %473 = vmatpush1.msra.mxu0 %v255
    %474 = vmatprep.subr.mxu0 %v258
    %475 = vmatpush1.msra.mxu0 %v257
    %476 = vmatprep.subr.mxu0 %v260
    %477 = vmatpush1.msra.mxu0 %v259
    %478 = vmatprep.subr.mxu0 %v262
    %479 = vmatpush1.msra.mxu0 %v261
    %480 = vmatprep.subr.mxu0 %v264
    %481 = vmatpush1.msra.mxu0 %v263
    %482 = vmatprep.subr.mxu0 %v266
    %483 = vmatpush1.msra.mxu0 %v265
    %484 = vmatprep.subr.mxu0 %v268
    %485 = vmatpush1.msra.mxu0 %v267
    %486 = vmatprep.mubr.f32.mxu0 %v132
    %487 = vmatmul.mubr.f32.gmra.mrb[0].mxu0 %v131
    %v488 = vpop.f32.mrb[0].mxu0
    %v489 = vadd.f32 %v412, %v488
    %v490 = vpop.f32.mrb[0].mxu0
    %v491 = vadd.f32 %v414, %v490
    %492 = vmatprep.mubr.f32.mxu0 %v138
    %493 = vmatmul.mubr.f32.gmra.mrb[0].mxu0 %v137
    %v494 = vpop.f32.mrb[0].mxu0
    %v495 = vadd.f32 %v418, %v494
    %v496 = vpop.f32.mrb[0].mxu0
    %v497 = vadd.f32 %v420, %v496
    %498 = vdwg.mxu0
    %499 = vmatprep.subr.mxu0 %v270
    %500 = vmatpush1.msra.mxu0 %v269
    %501 = vmatprep.subr.mxu0 %v272
    %502 = vmatpush1.msra.mxu0 %v271
    %503 = vmatprep.subr.mxu0 %v274
    %504 = vmatpush1.msra.mxu0 %v273
    %505 = vmatprep.subr.mxu0 %v276
    %506 = vmatpush1.msra.mxu0 %v275
    %507 = vmatprep.subr.mxu0 %v278
    %508 = vmatpush1.msra.mxu0 %v277
    %509 = vmatprep.subr.mxu0 %v280
    %510 = vmatpush1.msra.mxu0 %v279
    %511 = vmatprep.subr.mxu0 %v282
    %512 = vmatpush1.msra.mxu0 %v281
    %513 = vmatprep.subr.mxu0 %v284
    %514 = vmatpush1.msra.mxu0 %v283
    %515 = vmatprep.subr.mxu0 %v286
    %516 = vmatpush1.msra.mxu0 %v285
    %517 = vmatprep.subr.mxu0 %v288
    %518 = vmatpush1.msra.mxu0 %v287
    %519 = vmatprep.subr.mxu0 %v290
    %520 = vmatpush1.msra.mxu0 %v289
    %521 = vmatprep.subr.mxu0 %v292
    %522 = vmatpush1.msra.mxu0 %v291
    %523 = vmatprep.subr.mxu0 %v294
    %524 = vmatpush1.msra.mxu0 %v293
    %525 = vmatprep.subr.mxu0 %v296
    %526 = vmatpush1.msra.mxu0 %v295
    %527 = vmatprep.subr.mxu0 %v298
    %528 = vmatpush1.msra.mxu0 %v297
    %529 = vmatprep.subr.mxu0 %v300
    %530 = vmatpush1.msra.mxu0 %v299
    %531 = vmatprep.subr.mxu0 %v302
    %532 = vmatpush1.msra.mxu0 %v301
    %533 = vmatprep.subr.mxu0 %v304
    %534 = vmatpush1.msra.mxu0 %v303
    %535 = vmatprep.subr.mxu0 %v306
    %536 = vmatpush1.msra.mxu0 %v305
    %537 = vmatprep.subr.mxu0 %v308
    %538 = vmatpush1.msra.mxu0 %v307
    %539 = vmatprep.subr.mxu0 %v310
    %540 = vmatpush1.msra.mxu0 %v309
    %541 = vmatprep.subr.mxu0 %v312
    %542 = vmatpush1.msra.mxu0 %v311
    %543 = vmatprep.subr.mxu0 %v314
    %544 = vmatpush1.msra.mxu0 %v313
    %545 = vmatprep.subr.mxu0 %v316
    %546 = vmatpush1.msra.mxu0 %v315
    %547 = vmatprep.subr.mxu0 %v318
    %548 = vmatpush1.msra.mxu0 %v317
    %549 = vmatprep.subr.mxu0 %v320
    %550 = vmatpush1.msra.mxu0 %v319
    %551 = vmatprep.subr.mxu0 %v322
    %552 = vmatpush1.msra.mxu0 %v321
    %553 = vmatprep.subr.mxu0 %v324
    %554 = vmatpush1.msra.mxu0 %v323
    %555 = vmatprep.subr.mxu0 %v326
    %556 = vmatpush1.msra.mxu0 %v325
    %557 = vmatprep.subr.mxu0 %v328
    %558 = vmatpush1.msra.mxu0 %v327
    %559 = vmatprep.subr.mxu0 %v330
    %560 = vmatpush1.msra.mxu0 %v329
    %561 = vmatprep.subr.mxu0 %v332
    %562 = vmatpush1.msra.mxu0 %v331
    %563 = vmatprep.mubr.f32.mxu0 %v134
    %564 = vmatmul.mubr.f32.gmra.mrb[0].mxu0 %v133
    %v565 = vpop.f32.mrb[0].mxu0
    %v566 = vadd.f32 %v489, %v565
    %v567 = vpop.f32.mrb[0].mxu0
    %v568 = vadd.f32 %v491, %v567
    %569 = vmatprep.mubr.f32.mxu0 %v140
    %570 = vmatmul.mubr.f32.gmra.mrb[0].mxu0 %v139
    %v571 = vpop.f32.mrb[0].mxu0
    %v572 = vadd.f32 %v495, %v571
    %v573 = vpop.f32.mrb[0].mxu0
    %v574 = vadd.f32 %v497, %v573
    %575 = vdwg.mxu0
    %576 = vst [vmem:[#allocation8] sm:$0xff] %v566
    %577 = vst [vmem:[#allocation8 + $0x8] sm:$0xff] %v568
    %578 = vst [vmem:[#allocation8 + $0x10] sm:$0xff] %v572
    %579 = vst [vmem:[#allocation8 + $0x18] sm:$0xff] %v574
    // Predicated region
    $region26: #{tpu_custom_call.1} parent=1 // pred_check
      _
    $region27: #{tpu_custom_call.1} parent=1 // pred_check_branch
      %581 = sbr.rel (0) target = $region29
    $region28: #{tpu_custom_call.1} parent=1 // pred_region
      %s583 = ssub.s32 512, 512
      %584 = vsyncadd [#allocation5], %s583
      %s585 = sshll.u32 [#allocation8], 4
      %s586 = int_to_ptr.vmem [resolvable:$true] %s585
      %591 = dma.vmem_to_hbm [thread:$0]  %s586, 512, %s3, [#allocation5], 256, 256, 16
    $region29: #{tpu_custom_call.1} parent=1 // pred_fallthru
      _
    // Predicated region
    $region30: #{tpu_custom_call.1} parent=1 // pred_check
      _
    $region31: #{tpu_custom_call.1} parent=1 // pred_check_branch
      %593 = sbr.rel (0) target = $region33
    $region32: #{tpu_custom_call.1} parent=1 // pred_region
      %594 = dma.done [#allocation5], 512
    $region33: #{tpu_custom_call.1} parent=1 // pred_fallthru
      _
    %595 = vsyncpa [#allocation4], 1
    %596 = vsyncpa [#allocation7], 1
    %597 = vsyncpa [#allocation5], 1

</llo_original>
